<compile_context>
chip_gen: v7x
topology: tpu7x:2x2x1
jax: 0.10.0
libtpu: 0.0.40
codegen_flags: <defaults>
</compile_context>

<pallas_src>
import numpy as np
import jax
import jax.numpy as jnp
from jax import lax
from jax.experimental import pallas as pl
from jax.experimental.pallas import tpu as pltpu


_TB_CAP = 512    # max rows per block (multiple of 8)
_TN_CAP = 1024   # max lanes per block (multiple of 128)


def _num_tensorcores():
    """Best-effort TensorCores-per-device.  The megacore batch split only pays
    off on v7x (2 TCs/chip); default to 1 (safe / correct everywhere)."""
    try:
        d = jax.devices()[0]
        n = getattr(d, "num_cores", None)
        if isinstance(n, int) and n >= 1:
            return min(int(n), 2)
        kind = str(getattr(d, "device_kind", "")).lower()
        if "v7" in kind or "7x" in kind:
            return 2
    except Exception:
        pass
    return 1


# ---------------------------------------------------------------------------
# Pallas kernel (all remainder handling specialized statically)
# ---------------------------------------------------------------------------
def _make_kernel(B, N, TB, TN, OUT_R, nb, nb_total):
    n_groups_full = TB // 8                    # 8-row groups in a full batch tile
    rows_last = B - (nb_total - 1) * TB        # valid rows in the last batch tile
    full_last = rows_last // 8
    rem_last = rows_last % 8
    has_row_rem = (TB >= 8) and (rows_last != TB)
    has_col_rem = (N % TN) != 0

    def kernel(scores_ref, logits_ref, gt_ref, ssq_ref, psum_ref):
        n_i = pl.program_id(1)
        b_i = pl.program_id(2)

        # Each core's sub-grid starts at (n=0, b=0) and its output block index
        # depends only on the parallel axis p, so zero-initializing on the
        # first (n, b) step is safe.  NOTE: fragile if grid axes are reordered.
        @pl.when((n_i == 0) & (b_i == 0))
        def _init():
            ssq_ref[...] = jnp.zeros_like(ssq_ref)
            psum_ref[...] = jnp.zeros_like(psum_ref)

        def accum(num_groups, tail_rows):
            # Returns (A, L), shape (OUT_R, TN):
            #   A = sum over valid rows of (l - g)^2,  L = sum over valid rows of l.
            if TB < 8:                         # tiny batch: one sub-8-row group
                l = logits_ref[...].astype(jnp.float32)
                g = gt_ref[...].astype(jnp.float32)
                d = l - g
                return d * d, l

            zero = jnp.zeros((OUT_R, TN), jnp.float32)

            def body(r, carry):
                acc_a, acc_l = carry
                off = pl.multiple_of(r * 8, 8)
                l = logits_ref[pl.ds(off, 8), :].astype(jnp.float32)
                g = gt_ref[pl.ds(off, 8), :].astype(jnp.float32)
                d = l - g
                return acc_a + d * d, acc_l + l

            if num_groups > 0:
                acc_a, acc_l = lax.fori_loop(0, num_groups, body, (zero, zero),
                                             unroll=min(4, num_groups))
            else:
                acc_a, acc_l = zero, zero

            if tail_rows:                      # statically-masked partial group
                base = num_groups * 8
                rmask = lax.broadcasted_iota(jnp.int32, (8, 1), 0) < tail_rows
                l = logits_ref[pl.ds(base, 8), :].astype(jnp.float32)
                g = gt_ref[pl.ds(base, 8), :].astype(jnp.float32)
                l = jnp.where(rmask, l, 0.0)   # select: OOB garbage (even NaN) -> 0
                g = jnp.where(rmask, g, 0.0)
                d = l - g
                acc_a = acc_a + d * d
                acc_l = acc_l + l
            return acc_a, acc_l

        def scale_and_accumulate(acc_a, acc_l):
            # scores is constant across rows -> apply it once per grid step.
            s = scores_ref[...].astype(jnp.float32)          # (1, TN)
            c_psum = s * acc_l                               # sum_rows(scores*logits)
            c_ssq = (s * s) * acc_a                          # sum_rows(scores^2*(l-g)^2)
            if has_col_rem:
                col = n_i * TN + lax.broadcasted_iota(jnp.int32, (1, TN), 1)
                valid = col < N
                c_psum = jnp.where(valid, c_psum, 0.0)       # select kills OOB NaNs
                c_ssq = jnp.where(valid, c_ssq, 0.0)
            ssq_ref[...] += c_ssq
            psum_ref[...] += c_psum

        if not has_row_rem:
            a_p, l_p = accum(n_groups_full, 0)
            scale_and_accumulate(a_p, l_p)
        elif nb_total == 1:
            a_p, l_p = accum(full_last, rem_last)
            scale_and_accumulate(a_p, l_p)
        else:
            global_bt = pl.program_id(0) * nb + b_i
            is_last = global_bt == (nb_total - 1)

            @pl.when(jnp.logical_not(is_last))
            def _full_tile():
                a_p, l_p = accum(n_groups_full, 0)
                scale_and_accumulate(a_p, l_p)

            @pl.when(is_last)
            def _tail_tile():
                a_p, l_p = accum(full_last, rem_last)
                scale_and_accumulate(a_p, l_p)

    return kernel


def score_loss_pallas(logits, gt, scores, alpha=10.0, k=0.0):
    """Returns (loss, score_dist, mean_pred_score) like ScoreLoss.forward."""
    B, S, C = logits.shape
    assert gt.shape == (B, S, C)
    assert scores.shape == (1, S, C)
    N = S * C

    # Flatten (S, C) into one lane-dense feature axis (free reshape).  No host
    # padding and no host dtype convert: remainders are masked in-kernel and
    # inputs are upcast after the load.
    x = logits.reshape(B, N)
    g = gt.reshape(B, N)
    s = scores.reshape(1, N)

    # Tiles never exceed the real extents:
    #   batch  : multiple of 8   (or the full dim when B < 8)
    #   feature: multiple of 128 (or the full dim when N < 128)
    TB = B if B < 8 else min(_TB_CAP, (B // 8) * 8)
    TN = N if N < 128 else min(_TN_CAP, (N // 128) * 128)
    OUT_R = TB if TB < 8 else 8

    nb_total = -(-B // TB)
    nn = -(-N // TN)

    P = _num_tensorcores()
    if not (P >= 2 and nb_total >= 2 and nb_total % P == 0):
        P = 1
    nb = nb_total // P

    kernel = _make_kernel(B, N, TB, TN, OUT_R, nb, nb_total)

    bytes_accessed = int(x.size * x.dtype.itemsize + g.size * g.dtype.itemsize
                         + s.size * s.dtype.itemsize + 2 * P * OUT_R * TN * 4)
    cost = pl.CostEstimate(flops=6 * B * N, transcendentals=0,
                           bytes_accessed=bytes_accessed)

    ssq_p, psum_p = pl.pallas_call(
        kernel,
        out_shape=(
            jax.ShapeDtypeStruct((P * OUT_R, TN), jnp.float32),
            jax.ShapeDtypeStruct((P * OUT_R, TN), jnp.float32),
        ),
        grid_spec=pltpu.PrefetchScalarGridSpec(
            num_scalar_prefetch=0,
            grid=(P, nn, nb),
            in_specs=[
                # scores: block index changes only when the feature tile changes,
                # so it is only re-DMA'd nn times total.
                pl.BlockSpec((1, TN), lambda p, n, b: (0, n)),
                pl.BlockSpec((TB, TN), lambda p, n, b: (p * nb + b, n)),  # logits
                pl.BlockSpec((TB, TN), lambda p, n, b: (p * nb + b, n)),  # gt
            ],
            out_specs=(
                pl.BlockSpec((OUT_R, TN), lambda p, n, b: (p, 0)),  # per-core ssq
                pl.BlockSpec((OUT_R, TN), lambda p, n, b: (p, 0)),  # per-core psum
            ),
        ),
        compiler_params=pltpu.CompilerParams(
            dimension_semantics=("parallel", "arbitrary", "arbitrary"),
            vmem_limit_bytes=48 * 1024 * 1024,
        ),
        cost_estimate=cost,
    )(s, x, g)

    # One tiny final reduction + scalar glue in JAX.
    ssq = jnp.sum(ssq_p)
    psum = jnp.sum(psum_p)
    score_dist = jnp.sqrt(ssq)
    mean_pred_score = psum / jnp.float32(B * S * C)
    loss = score_dist + alpha * k * (1.0 / mean_pred_score + mean_pred_score)
    return loss, score_dist, mean_pred_score


# ---------------------------------------------------------------------------
# Host-side glue mirroring ScoreLoss.__init__ / forward's numpy code
# (python `random.uniform` made deterministic).
# ---------------------------------------------------------------------------
def _norm_func(x, u, sig):
    return np.exp(-(x - u) ** 2 / (2 * sig ** 2)) / (np.sqrt(2 * np.pi) * sig)


def build_scores(score_level, n_classes):
    sc = np.arange(score_level).reshape(-1, 1)
    sc = np.tile(sc, (1, n_classes))[None, :, :]          # (1, S, C)
    return jnp.asarray(sc, dtype=jnp.float32)


def build_gt(targets_np, score_level, n_classes, seed=0):
    # TODO(synk): the per-sample random gt construction (python random + numpy
    # loops in the PyTorch forward) has no Pallas equivalent; kept host-side.
    x = np.linspace(0, 1, score_level)
    gt_true = _norm_func(x, 0.8, 0.2)
    gt_true = gt_true / np.sum(gt_true)                    # (S,)

    rng = np.random.default_rng(seed)                      # deterministic stand-in
    B = targets_np.shape[0]
    gt = np.zeros((B, score_level, n_classes), dtype=np.float32)
    for j in range(B):
        for i in range(n_classes):
            if int(targets_np[j]) == i:
                gt[j, :, i] = gt_true
            else:
                u = rng.uniform(0.0, 0.5)
                sig = rng.uniform(0.6, 1.0)
                gt_false = _norm_func(x, u, sig)
                gt[j, :, i] = gt_false / np.sum(gt_false)
    return jnp.asarray(gt, dtype=jnp.float32)


# ---------------------------------------------------------------------------
# Pure-JAX reference (correctness check).
# ---------------------------------------------------------------------------
def score_loss_ref(logits, gt, scores, alpha=10.0, k=0.0):
    pred = scores * logits
    gts = scores * gt
    score_dist = jnp.sqrt(jnp.sum(jnp.square(pred - gts)))
    mean_pred = jnp.mean(pred)
    loss = score_dist + alpha * k * (1.0 / mean_pred + mean_pred)
    return loss, score_dist, mean_pred


def _run_case(key, B, S, C, alpha=10.0, k=0.0):
    k_logits, k_targets = jax.random.split(key)
    logits = jax.nn.softmax(
        jax.random.normal(k_logits, (B, S, C), dtype=jnp.float32), axis=1)
    targets = jax.random.randint(k_targets, (B,), 0, C)

    scores = build_scores(S, C)
    gt = build_gt(np.asarray(targets), S, C, seed=0)

    out = score_loss_pallas(logits, gt, scores, alpha, k)
    out = jax.block_until_ready(out)

    ref = score_loss_ref(logits, gt, scores, alpha, k)
    for got, want in zip(out, ref):
        np.testing.assert_allclose(float(got), float(want), rtol=1e-4, atol=1e-5)


if __name__ == "__main__":
    base = jax.random.PRNGKey(0)
    # Small config implied by the module: batch=2, classes=4, scoreLevel=8.
    _run_case(jax.random.fold_in(base, 0), B=2, S=8, C=4)
    # Exercise batch-remainder + feature-remainder masking (B=10, N=153).
    _run_case(jax.random.fold_in(base, 1), B=10, S=17, C=9)
    # Exercise the multi-group fori_loop path with an aligned feature axis.
    _run_case(jax.random.fold_in(base, 2), B=24, S=16, C=8)
    print("KERNEL_OK")
</pallas_src>

<mosaic_0001>
module attributes {stable_mosaic.version = 11 : i64} {
  func.func @kernel(%arg0: i32, %arg1: i32, %arg2: i32, %arg3: memref<1x32xf32, #tpu.memory_space<vmem>>, %arg4: memref<2x32xf32, #tpu.memory_space<vmem>>, %arg5: memref<2x32xf32, #tpu.memory_space<vmem>>, %arg6: memref<2x32xf32, #tpu.memory_space<vmem>>, %arg7: memref<2x32xf32, #tpu.memory_space<vmem>>) attributes {dimension_semantics = [#tpu.dimension_semantics<parallel>, #tpu.dimension_semantics<arbitrary>, #tpu.dimension_semantics<arbitrary>], iteration_bounds = array<i64: 1, 1, 1>, scalar_prefetch = 0 : i64, scratch_operands = 0 : i64, tpu.core_type = #tpu.core_type<tc>, window_params = [{transform_indices = @transform_0, window_bounds = array<i64: 1, 32>}, {transform_indices = @transform_1, window_bounds = array<i64: 2, 32>}, {transform_indices = @transform_2, window_bounds = array<i64: 2, 32>}, {transform_indices = @transform_3, window_bounds = array<i64: 2, 32>}, {transform_indices = @transform_4, window_bounds = array<i64: 2, 32>}]} {
    %c0_i32 = arith.constant 0 : i32
    %0 = arith.cmpi eq, %arg1, %c0_i32 : i32
    %c0_i32_0 = arith.constant 0 : i32
    %1 = arith.cmpi eq, %arg2, %c0_i32_0 : i32
    %2 = arith.andi %0, %1 : i1
    %3 = arith.extui %2 : i1 to i32
    %c0_i32_1 = arith.constant 0 : i32
    %4 = arith.cmpi ne, %3, %c0_i32_1 : i32
    scf.if %4 {
      %cst = arith.constant 0.000000e+00 : f32
      %21 = vector.broadcast %cst : f32 to vector<2x32xf32>
      %c0_15 = arith.constant 0 : index
      %c0_16 = arith.constant 0 : index
      %22 = vector.load %arg6[%c0_15, %c0_16] : memref<2x32xf32, #tpu.memory_space<vmem>>, vector<2x32xf32>
      tpu.vector_store %arg6[%c0_15, %c0_16], %21 {strides = array<i32>} : memref<2x32xf32, #tpu.memory_space<vmem>>, vector<2x32xf32>,
      %cst_17 = arith.constant 0.000000e+00 : f32
      %23 = vector.broadcast %cst_17 : f32 to vector<2x32xf32>
      %c0_18 = arith.constant 0 : index
      %c0_19 = arith.constant 0 : index
      %24 = vector.load %arg7[%c0_18, %c0_19] : memref<2x32xf32, #tpu.memory_space<vmem>>, vector<2x32xf32>
      tpu.vector_store %arg7[%c0_18, %c0_19], %23 {strides = array<i32>} : memref<2x32xf32, #tpu.memory_space<vmem>>, vector<2x32xf32>,
    } else {
    }
    %c0 = arith.constant 0 : index
    %c0_2 = arith.constant 0 : index
    %5 = vector.load %arg4[%c0, %c0_2] : memref<2x32xf32, #tpu.memory_space<vmem>>, vector<2x32xf32>
    %c0_3 = arith.constant 0 : index
    %c0_4 = arith.constant 0 : index
    %6 = vector.load %arg5[%c0_3, %c0_4] : memref<2x32xf32, #tpu.memory_space<vmem>>, vector<2x32xf32>
    %7 = arith.subf %5, %6 : vector<2x32xf32>
    %8 = arith.mulf %7, %7 : vector<2x32xf32>
    %c0_5 = arith.constant 0 : index
    %c0_6 = arith.constant 0 : index
    %9 = vector.load %arg3[%c0_5, %c0_6] : memref<1x32xf32, #tpu.memory_space<vmem>>, vector<1x32xf32>
    %10 = vector.broadcast %9 : vector<1x32xf32> to vector<2x32xf32>
    %11 = arith.mulf %10, %5 : vector<2x32xf32>
    %12 = arith.mulf %9, %9 : vector<1x32xf32>
    %13 = vector.broadcast %12 : vector<1x32xf32> to vector<2x32xf32>
    %14 = arith.mulf %13, %8 : vector<2x32xf32>
    %c0_7 = arith.constant 0 : index
    %c0_8 = arith.constant 0 : index
    %15 = vector.load %arg6[%c0_7, %c0_8] : memref<2x32xf32, #tpu.memory_space<vmem>>, vector<2x32xf32>
    %16 = arith.addf %15, %14 : vector<2x32xf32>
    %c0_9 = arith.constant 0 : index
    %c0_10 = arith.constant 0 : index
    %17 = vector.load %arg6[%c0_9, %c0_10] : memref<2x32xf32, #tpu.memory_space<vmem>>, vector<2x32xf32>
    tpu.vector_store %arg6[%c0_9, %c0_10], %16 {strides = array<i32>} : memref<2x32xf32, #tpu.memory_space<vmem>>, vector<2x32xf32>,
    %c0_11 = arith.constant 0 : index
    %c0_12 = arith.constant 0 : index
    %18 = vector.load %arg7[%c0_11, %c0_12] : memref<2x32xf32, #tpu.memory_space<vmem>>, vector<2x32xf32>
    %19 = arith.addf %18, %11 : vector<2x32xf32>
    %c0_13 = arith.constant 0 : index
    %c0_14 = arith.constant 0 : index
    %20 = vector.load %arg7[%c0_13, %c0_14] : memref<2x32xf32, #tpu.memory_space<vmem>>, vector<2x32xf32>
    tpu.vector_store %arg7[%c0_13, %c0_14], %19 {strides = array<i32>} : memref<2x32xf32, #tpu.memory_space<vmem>>, vector<2x32xf32>,
    return
  }
  func.func @transform_0(%arg0: i32, %arg1: i32, %arg2: i32) -> (i32, i32) {
    %c0_i32 = arith.constant 0 : i32
    %c0_i32_0 = arith.constant 0 : i32
    return %c0_i32, %arg1 : i32, i32
  }
  func.func @transform_1(%arg0: i32, %arg1: i32, %arg2: i32) -> (i32, i32) {
    %c1_i32 = arith.constant 1 : i32
    %0 = arith.muli %arg0, %c1_i32 : i32
    %1 = arith.addi %0, %arg2 : i32
    %c0_i32 = arith.constant 0 : i32
    return %1, %arg1 : i32, i32
  }
  func.func @transform_2(%arg0: i32, %arg1: i32, %arg2: i32) -> (i32, i32) {
    %c1_i32 = arith.constant 1 : i32
    %0 = arith.muli %arg0, %c1_i32 : i32
    %1 = arith.addi %0, %arg2 : i32
    %c0_i32 = arith.constant 0 : i32
    return %1, %arg1 : i32, i32
  }
  func.func @transform_3(%arg0: i32, %arg1: i32, %arg2: i32) -> (i32, i32) {
    %c0_i32 = arith.constant 0 : i32
    %c0_i32_0 = arith.constant 0 : i32
    return %arg0, %c0_i32 : i32, i32
  }
  func.func @transform_4(%arg0: i32, %arg1: i32, %arg2: i32) -> (i32, i32) {
    %c0_i32 = arith.constant 0 : i32
    %c0_i32_0 = arith.constant 0 : i32
    return %arg0, %c0_i32 : i32, i32
  }
}

</mosaic_0001>

<llo_original>
// kernel: tpu_custom_call.1
$region0: #{tpu_custom_call.1}
  #allocation0 [shape = 'u32[]', space=smem, size = 0x4, offset = 0x4, fixed_abs, tag = 'smem constant byte address 0x4 - core index']
  #allocation1 [shape = 'u32[144,128]{1,0:T(1,128)}', space=vmem, size = 0x12000, scoped, tag = 'internal scratch']
  %s0 = inlined_call_operand.hbm [shape: f32[1,32], index: 0, kind: input, shape index: {}]
  %s1 = inlined_call_operand.vmem [shape: f32[2,32], index: 1, kind: input, shape index: {}]
  %s2 = inlined_call_operand.vmem [shape: f32[2,32], index: 2, kind: input, shape index: {}]
  %s3 = inlined_call_operand.hbm [shape: f32[2,32], index: 3, kind: output, shape index: {0}]
  %s4 = inlined_call_operand.hbm [shape: f32[2,32], index: 4, kind: output, shape index: {1}]
  %5 = xla_tuple %s3, %s4
  %s6 = sld [smem:[#allocation0]]
  $region38: #{tpu_custom_call.1} parent=0
    _
  %s8 = ssub.s32 1, %s6
  %s9 = scalar_select 0, %s8, %s6
  $region1: #{tpu_custom_call.1} parent=0
    #allocation2 [shape = 'u8[512]{0}', space=vmem, size = 0x400, scoped, tag = 'input window, operand 0, single buffered']
    #allocation3 [shape = 's32[1]{0}', space=sflag, size = 0x4, scoped, tag = 'scoped memory for tpu_custom_call.1']
    #allocation4 [shape = 's32[1]{0}', space=sflag, size = 0x4, scoped, tag = 'scoped memory for tpu_custom_call.1']
    #allocation5 [shape = 'u8[1024]{0}', space=vmem, size = 0x400, scoped, tag = 'output window, operand 0, single buffered']
    #allocation6 [shape = 'u8[1024]{0}', space=vmem, size = 0x400, scoped, tag = 'output window, operand 1, single buffered']
    #allocation7 [shape = 's32[1]{0}', space=sflag, size = 0x4, scoped, tag = 'scoped memory for tpu_custom_call.1']
    %10 = vsyncpa [#allocation3], 0
    %11 = vsyncpa [#allocation4], 0
    %12 = vsyncpa [#allocation7], 0
    // Predicated region
    $region2: #{tpu_custom_call.1} parent=1 // pred_check
      _
    $region3: #{tpu_custom_call.1} parent=1 // pred_check_branch
      %14 = sbr.rel (0) target = $region5
    $region4: #{tpu_custom_call.1} parent=1 // pred_region
      %s16 = ssub.s32 16, 16
      %17 = vsyncadd [#allocation3], %s16
      %s19 = sshll.u32 [#allocation2], 4
      %s20 = int_to_ptr.vmem [resolvable:$true] %s19
      %22 = dma.hbm_to_vmem [thread:$0]  %s0, 16, %s20, [#allocation3]
    $region5: #{tpu_custom_call.1} parent=1 // pred_fallthru
      _
    // Predicated region
    $region6: #{tpu_custom_call.1} parent=1 // pred_check
      _
    $region7: #{tpu_custom_call.1} parent=1 // pred_check_branch
      %24 = sbr.rel (0) target = $region9
    $region8: #{tpu_custom_call.1} parent=1 // pred_region
      %s25 = sadd.s32 0, 0
      %p26 = scmp.lt.s32.totalorder %s25, 0
      %s27 = scalar_select %p26, %s25, 0
      %s28 = smul.addr %s27, 2
      %s29 = scalar_lea.vmem %s1, %s28
      %s30 = sadd.s32 0, 0
    $region9: #{tpu_custom_call.1} parent=1 // pred_fallthru
      _
    // Predicated region
    $region10: #{tpu_custom_call.1} parent=1 // pred_check
      _
    $region11: #{tpu_custom_call.1} parent=1 // pred_check_branch
      %32 = sbr.rel (0) target = $region13
    $region12: #{tpu_custom_call.1} parent=1 // pred_region
      %s33 = sadd.s32 0, 0
      %p34 = scmp.lt.s32.totalorder %s33, 0
      %s35 = scalar_select %p34, %s33, 0
      %s36 = smul.addr %s35, 2
      %s37 = scalar_lea.vmem %s2, %s36
      %s38 = sadd.s32 0, 0
    $region13: #{tpu_custom_call.1} parent=1 // pred_fallthru
      _
    // Predicated region
    $region14: #{tpu_custom_call.1} parent=1 // pred_check
      _
    $region15: #{tpu_custom_call.1} parent=1 // pred_check_branch
      %40 = sbr.rel (0) target = $region17
    $region16: #{tpu_custom_call.1} parent=1 // pred_region
      %41 = dma.done [#allocation3], 16
    $region17: #{tpu_custom_call.1} parent=1 // pred_fallthru
      _
    %s42 = sadd.s32 0, 0
    %p43 = scmp.lt.s32.totalorder %s42, 0
    %s44 = scalar_select %p43, %s42, 0
    %s45 = smul.addr %s44, 2
    %s46 = scalar_lea.vmem %s1, %s45
    %s47 = sadd.s32 0, 0
    %p48 = scmp.lt.s32.totalorder %s47, 0
    %s49 = scalar_select %p48, %s47, 0
    %s50 = smul.addr %s49, 2
    %s51 = scalar_lea.vmem %s2, %s50
    %s52 = sadd.s32 0, 0
    %p53 = scmp.lt.s32.totalorder %s52, 0
    %s54 = scalar_select %p53, %s52, 0
    %s55 = smul.addr %s54, 2
    %s56 = scalar_lea.vmem %s1, %s55
    %s57 = sadd.s32 0, 0
    %s58 = sadd.s32 0, 0
    %p59 = scmp.lt.s32.totalorder %s58, 0
    %s60 = scalar_select %p59, %s58, 0
    %s61 = smul.addr %s60, 2
    %s62 = scalar_lea.vmem %s2, %s61
    %s63 = sadd.s32 0, 0
    %p64 = scmp.eq.s32.totalorder 0, 0
    %p65 = scmp.eq.s32.totalorder 0, 0
    %p66 = pnand %p64, %p65
    %p67 = pneg %p66
    // Predicated region
    $region18: #{tpu_custom_call.1} parent=1 // pred_check
      _
    $region19: #{tpu_custom_call.1} parent=1 // pred_check_branch
      %69 = sbr.rel (%p66) target = $region21
    $region20: #{tpu_custom_call.1} parent=1 // pred_region
      %vm70 = vcmask 254976
      %71 = vst.msk [vmem:[#allocation5] sm:$0x3] %vm70, 0.0
      %72 = vst.msk [vmem:[#allocation6] sm:$0x3] %vm70, 0.0
    $region21: #{tpu_custom_call.1} parent=1 // pred_fallthru
      _
    %v73 = vld [vmem:[%s56] sm:$0x3]
    %v74 = vld [vmem:[%s62] sm:$0x3]
    %v75 = vsub.f32 %v73, %v74
    %v76 = vmul.f32 %v75, %v75
    %v77 = vld [vmem:[#allocation2] sm:$0x1]
    %v79 = vlaneseq
    %v80 = vshrl.u32 %v79, 7
    %v81 = vsub.s32 0, %v80
    %v82 = vrot.slane %v77, %v81
    %v84 = vmul.f32 %v82, %v73
    %v85 = vmul.f32 %v77, %v77
    %v87 = vlaneseq
    %v88 = vshrl.u32 %v87, 7
    %v89 = vsub.s32 0, %v88
    %v90 = vrot.slane %v85, %v89
    %v92 = vmul.f32 %v90, %v76
    %v93 = vld [vmem:[#allocation5] sm:$0x3]
    %v94 = vadd.f32 %v93, %v92
    %vm95 = vcmask 254976
    %96 = vst.msk [vmem:[#allocation5] sm:$0x3] %vm95, %v94
    %v97 = vld [vmem:[#allocation6] sm:$0x3]
    %v98 = vadd.f32 %v97, %v84
    %99 = vst.msk [vmem:[#allocation6] sm:$0x3] %vm95, %v98
    // Predicated region
    $region22: #{tpu_custom_call.1} parent=1 // pred_check
      _
    $region23: #{tpu_custom_call.1} parent=1 // pred_check_branch
      %101 = sbr.rel (0) target = $region25
    $region24: #{tpu_custom_call.1} parent=1 // pred_region
      %s103 = ssub.s32 32, 32
      %104 = vsyncadd [#allocation4], %s103
      %s106 = sshll.u32 [#allocation5], 4
      %s107 = int_to_ptr.vmem [resolvable:$true] %s106
      %109 = dma.vmem_to_hbm [thread:$0]  %s107, 32, %s3, [#allocation4]
    $region25: #{tpu_custom_call.1} parent=1 // pred_fallthru
      _
    // Predicated region
    $region26: #{tpu_custom_call.1} parent=1 // pred_check
      _
    $region27: #{tpu_custom_call.1} parent=1 // pred_check_branch
      %111 = sbr.rel (0) target = $region29
    $region28: #{tpu_custom_call.1} parent=1 // pred_region
      %s113 = ssub.s32 32, 32
      %114 = vsyncadd [#allocation7], %s113
      %s116 = sshll.u32 [#allocation6], 4
      %s117 = int_to_ptr.vmem [resolvable:$true] %s116
      %119 = dma.vmem_to_hbm [thread:$0]  %s117, 32, %s4, [#allocation7]
    $region29: #{tpu_custom_call.1} parent=1 // pred_fallthru
      _
    // Predicated region
    $region30: #{tpu_custom_call.1} parent=1 // pred_check
      _
    $region31: #{tpu_custom_call.1} parent=1 // pred_check_branch
      %121 = sbr.rel (0) target = $region33
    $region32: #{tpu_custom_call.1} parent=1 // pred_region
      %122 = dma.done [#allocation4], 32
    $region33: #{tpu_custom_call.1} parent=1 // pred_fallthru
      _
    // Predicated region
    $region34: #{tpu_custom_call.1} parent=1 // pred_check
      _
    $region35: #{tpu_custom_call.1} parent=1 // pred_check_branch
      %124 = sbr.rel (0) target = $region37
    $region36: #{tpu_custom_call.1} parent=1 // pred_region
      %125 = dma.done [#allocation7], 32
    $region37: #{tpu_custom_call.1} parent=1 // pred_fallthru
      _
    %126 = vsyncpa [#allocation3], 1
    %127 = vsyncpa [#allocation4], 1
    %128 = vsyncpa [#allocation7], 1

</llo_original>
